<compile_context>
chip_gen: v6e
topology: v6e:2x2x1
jax: 0.10.0
libtpu: 0.0.40
codegen_flags: <defaults>
</compile_context>

<pallas_src>
import jax
import jax.numpy as jnp
from jax.experimental import pallas as pl
from jax.experimental.pallas import tpu as pltpu


_ROW_TILE = 256    # sublane-axis tile (multiple of 8)
_COL_TILE = 2048   # lane-axis tile (multiple of 128); 256x2048 f32 = 2 MiB


def _clamp_kernel(x_ref, lo_ref, hi_ref, o_ref):
    # Pure elementwise hot path: two VPU ops per vreg, bounds broadcast
    # along the lane axis from a (rows, 1) column. No divide in-kernel.
    x = x_ref[...]
    o_ref[...] = jnp.minimum(jnp.maximum(x, lo_ref[...]), hi_ref[...])


def linf_ball_projection(x, new_mean, new_std):
    """Clamp x (N, C, H, W) per channel to [(0-mean)/std, (1-mean)/std].

    Functional equivalent of Linf_ball_projection.forward (which clamps
    in place and returns x).
    """
    N, C, H, W = x.shape

    # Bounds computed once in f32 in the wrapper (free; keeps the kernel
    # to mul-free max/min only).
    mean = jnp.asarray(new_mean, dtype=jnp.float32)
    std = jnp.asarray(new_std, dtype=jnp.float32)
    lower = (0.0 - mean) / std          # (C,)
    upper = (1.0 - mean) / std          # (C,)

    # Lane-dense 2D slab: one (image, channel) per row, spatial flattened
    # onto the 128-wide lane axis.
    R = N * C
    L = H * W
    x2 = x.reshape(R, L)

    # Per-row bounds column: row r -> channel r % C.
    lo_col = jnp.tile(lower, N).reshape(R, 1).astype(x.dtype)
    hi_col = jnp.tile(upper, N).reshape(R, 1).astype(x.dtype)

    # Block shapes: either the full dim (small arrays) or a fixed tile that
    # satisfies the (8, 128) divisibility rule; partial edge blocks are
    # masked by Pallas, which is safe for a pure elementwise op.
    tr = R if R <= _ROW_TILE else _ROW_TILE
    tc = L if L <= _COL_TILE else _COL_TILE
    grid = (pl.cdiv(R, tr), pl.cdiv(L, tc))

    out2 = pl.pallas_call(
        _clamp_kernel,
        out_shape=jax.ShapeDtypeStruct((R, L), x.dtype),
        grid_spec=pltpu.PrefetchScalarGridSpec(
            num_scalar_prefetch=0,
            grid=grid,
            in_specs=[
                pl.BlockSpec((tr, tc), lambda i, j: (i, j)),
                pl.BlockSpec((tr, 1), lambda i, j: (i, 0)),
                pl.BlockSpec((tr, 1), lambda i, j: (i, 0)),
            ],
            out_specs=pl.BlockSpec((tr, tc), lambda i, j: (i, j)),
        ),
        compiler_params=pltpu.CompilerParams(
            dimension_semantics=("parallel", "parallel"),
            # 2 MiB blocks, in+out double-buffered -> well under this on all
            # of v5e/v6e/v7x; raises v5e's 16 MiB default scoped limit.
            vmem_limit_bytes=32 * 1024 * 1024,
        ),
    )(x2, lo_col, hi_col)

    return out2.reshape(N, C, H, W)


if __name__ == "__main__":
    key = jax.random.PRNGKey(0)

    # Module hardcodes 3 channels (RGB bounds for indices 0, 1, 2).
    N, C, H, W = 2, 3, 16, 16
    # Spread x beyond the clamp range so the projection actually bites.
    x = jax.random.uniform(key, (N, C, H, W), dtype=jnp.float32,
                           minval=-4.0, maxval=4.0)

    # Deterministic dataset-style mean/std constants (ImageNet-like).
    new_mean = jnp.array([0.485, 0.456, 0.406], dtype=jnp.float32)
    new_std = jnp.array([0.229, 0.224, 0.225], dtype=jnp.float32)

    out = linf_ball_projection(x, new_mean, new_std)
    out = jax.block_until_ready(out)

    # Plain-JAX reference with identical semantics to the PyTorch forward.
    lower = (0.0 - new_mean) / new_std
    upper = (1.0 - new_mean) / new_std
    ref = jnp.clip(x, lower.reshape(1, C, 1, 1), upper.reshape(1, C, 1, 1))

    assert out.shape == (N, C, H, W)
    assert jnp.allclose(out, ref, atol=1e-6, rtol=1e-6)

    print("KERNEL_OK")
</pallas_src>

<mosaic_0001>
module attributes {stable_mosaic.version = 11 : i64} {
  func.func @_clamp_kernel(%arg0: i32, %arg1: i32, %arg2: memref<6x256xf32, #tpu.memory_space<vmem>>, %arg3: memref<6x1xf32, #tpu.memory_space<vmem>>, %arg4: memref<6x1xf32, #tpu.memory_space<vmem>>, %arg5: memref<6x256xf32, #tpu.memory_space<vmem>>) attributes {dimension_semantics = [#tpu.dimension_semantics<parallel>, #tpu.dimension_semantics<parallel>], iteration_bounds = array<i64: 1, 1>, scalar_prefetch = 0 : i64, scratch_operands = 0 : i64, tpu.core_type = #tpu.core_type<tc>, window_params = [{transform_indices = @transform_0, window_bounds = array<i64: 6, 256>}, {transform_indices = @transform_1, window_bounds = array<i64: 6, 1>}, {transform_indices = @transform_2, window_bounds = array<i64: 6, 1>}, {transform_indices = @transform_3, window_bounds = array<i64: 6, 256>}]} {
    %c0 = arith.constant 0 : index
    %c0_0 = arith.constant 0 : index
    %0 = vector.load %arg2[%c0, %c0_0] : memref<6x256xf32, #tpu.memory_space<vmem>>, vector<6x256xf32>
    %c0_1 = arith.constant 0 : index
    %c0_2 = arith.constant 0 : index
    %1 = vector.load %arg3[%c0_1, %c0_2] : memref<6x1xf32, #tpu.memory_space<vmem>>, vector<6x1xf32>
    %2 = vector.broadcast %1 : vector<6x1xf32> to vector<6x256xf32>
    %3 = arith.maximumf %0, %2 : vector<6x256xf32>
    %c0_3 = arith.constant 0 : index
    %c0_4 = arith.constant 0 : index
    %4 = vector.load %arg4[%c0_3, %c0_4] : memref<6x1xf32, #tpu.memory_space<vmem>>, vector<6x1xf32>
    %5 = vector.broadcast %4 : vector<6x1xf32> to vector<6x256xf32>
    %6 = arith.minimumf %3, %5 : vector<6x256xf32>
    %c0_5 = arith.constant 0 : index
    %c0_6 = arith.constant 0 : index
    %7 = vector.load %arg5[%c0_5, %c0_6] : memref<6x256xf32, #tpu.memory_space<vmem>>, vector<6x256xf32>
    tpu.vector_store %arg5[%c0_5, %c0_6], %6 {strides = array<i32>} : memref<6x256xf32, #tpu.memory_space<vmem>>, vector<6x256xf32>,
    return
  }
  func.func @transform_0(%arg0: i32, %arg1: i32) -> (i32, i32) {
    %c0_i32 = arith.constant 0 : i32
    return %arg0, %arg1 : i32, i32
  }
  func.func @transform_1(%arg0: i32, %arg1: i32) -> (i32, i32) {
    %c0_i32 = arith.constant 0 : i32
    %c0_i32_0 = arith.constant 0 : i32
    return %arg0, %c0_i32 : i32, i32
  }
  func.func @transform_2(%arg0: i32, %arg1: i32) -> (i32, i32) {
    %c0_i32 = arith.constant 0 : i32
    %c0_i32_0 = arith.constant 0 : i32
    return %arg0, %c0_i32 : i32, i32
  }
  func.func @transform_3(%arg0: i32, %arg1: i32) -> (i32, i32) {
    %c0_i32 = arith.constant 0 : i32
    return %arg0, %arg1 : i32, i32
  }
}

</mosaic_0001>

<llo_original>
// kernel: tpu_custom_call.1
$region0: #{tpu_custom_call.1}
  #allocation0 [shape = 'u32[]', space=smem, size = 0x4, offset = 0x4, fixed_abs, tag = 'smem constant byte address 0x4 - core index']
  #allocation1 [shape = 'u32[144,128]{1,0:T(1,128)}', space=vmem, size = 0x12000, scoped, tag = 'internal scratch']
  %s0 = inlined_call_operand.vmem [shape: f32[6,256], index: 0, kind: input, shape index: {}]
  %s1 = inlined_call_operand.vmem [shape: f32[6,1], index: 1, kind: input, shape index: {}]
  %s2 = inlined_call_operand.vmem [shape: f32[6,1], index: 2, kind: input, shape index: {}]
  %s3 = inlined_call_operand.hbm [shape: f32[6,256], index: 3, kind: output, shape index: {}]
  %s4 = sld [smem:[#allocation0]]
  $region22: #{tpu_custom_call.1} parent=0
    _
  %s6 = ssub.s32 1, %s4
  %s7 = scalar_select 0, %s6, %s4
  $region1: #{tpu_custom_call.1} parent=0
    #allocation2 [shape = 'u8[8192]{0}', space=vmem, size = 0x2000, scoped, tag = 'output window, operand 0, single buffered']
    #allocation3 [shape = 's32[1]{0}', space=sflag, size = 0x4, scoped, tag = 'scoped memory for tpu_custom_call.1']
    %8 = vsyncpa [#allocation3], 0
    // Predicated region
    $region2: #{tpu_custom_call.1} parent=1 // pred_check
      _
    $region3: #{tpu_custom_call.1} parent=1 // pred_check_branch
      %10 = sbr.rel (0) target = $region5
    $region4: #{tpu_custom_call.1} parent=1 // pred_region
      _
    $region5: #{tpu_custom_call.1} parent=1 // pred_fallthru
      _
    // Predicated region
    $region6: #{tpu_custom_call.1} parent=1 // pred_check
      _
    $region7: #{tpu_custom_call.1} parent=1 // pred_check_branch
      %12 = sbr.rel (0) target = $region9
    $region8: #{tpu_custom_call.1} parent=1 // pred_region
      _
    $region9: #{tpu_custom_call.1} parent=1 // pred_fallthru
      _
    // Predicated region
    $region10: #{tpu_custom_call.1} parent=1 // pred_check
      _
    $region11: #{tpu_custom_call.1} parent=1 // pred_check_branch
      %14 = sbr.rel (0) target = $region13
    $region12: #{tpu_custom_call.1} parent=1 // pred_region
      _
    $region13: #{tpu_custom_call.1} parent=1 // pred_fallthru
      _
    %v15 = vld [vmem:[%s0] sm:$0x3f]
    %v16 = vld [vmem:[%s0 + $0x8] sm:$0x3f]
    %v17 = vld [vmem:[%s1] sm:$0x3f]
    %19 = vset.pattern.permute.xlu0 0
    %20 = vperm.xlu0 %19, %v17
    %v21 = vpop.permute.xlu0 %20
    %v23 = vmax.f32 %v15, %v21
    %v24 = vmax.f32 %v16, %v21
    %v25 = vld [vmem:[%s2] sm:$0x3f]
    %27 = vset.pattern.permute.xlu0 0
    %28 = vperm.xlu0 %27, %v25
    %v29 = vpop.permute.xlu0 %28
    %v31 = vmin.f32 %v23, %v29
    %v32 = vmin.f32 %v24, %v29
    %33 = vst [vmem:[#allocation2] sm:$0x3f] %v31
    %34 = vst [vmem:[#allocation2 + $0x8] sm:$0x3f] %v32
    // Predicated region
    $region14: #{tpu_custom_call.1} parent=1 // pred_check
      _
    $region15: #{tpu_custom_call.1} parent=1 // pred_check_branch
      %36 = sbr.rel (0) target = $region17
    $region16: #{tpu_custom_call.1} parent=1 // pred_region
      %s38 = ssub.s32 256, 256
      %39 = vsyncadd [#allocation3], %s38
      %s41 = sshll.u32 [#allocation2], 4
      %s42 = int_to_ptr.vmem [resolvable:$true] %s41
      %44 = dma.vmem_to_hbm [thread:$0]  %s42, 256, %s3, [#allocation3]
    $region17: #{tpu_custom_call.1} parent=1 // pred_fallthru
      _
    // Predicated region
    $region18: #{tpu_custom_call.1} parent=1 // pred_check
      _
    $region19: #{tpu_custom_call.1} parent=1 // pred_check_branch
      %46 = sbr.rel (0) target = $region21
    $region20: #{tpu_custom_call.1} parent=1 // pred_region
      %47 = dma.done [#allocation3], 256
    $region21: #{tpu_custom_call.1} parent=1 // pred_fallthru
      _
    %48 = vsyncpa [#allocation3], 1

</llo_original>
